<compile_context>
chip_gen: v6e
topology: v6e:2x2x1
jax: 0.10.0
libtpu: 0.0.40
codegen_flags: <defaults>
</compile_context>

<pallas_src>
import functools

import jax
import jax.numpy as jnp
from jax.experimental import pallas as pl
from jax.experimental.pallas import tpu as pltpu


def _round_up(x, m):
    return ((x + m - 1) // m) * m


def mlp_kernel(*refs):
    """Fused packed MLP on one batch tile resident in VMEM.

    refs = (x_ref, w0_ref, b0_ref, w1_ref, b1_ref, ..., o_ref)
    Hidden layers: ReLU (dropout == identity in eval); last layer: sigmoid.
    Weights are the block-diagonal "row-packed" versions built in the wrapper,
    so every ref here is lane-dense (last dim a multiple of 128).
    """
    # TODO(synk): training-mode dropout (pltpu.prng_seed / prng_random_bits) not implemented.
    x_ref, o_ref = refs[0], refs[-1]
    wb = refs[1:-1]
    n_layers = len(wb) // 2

    h = x_ref[...]
    for li in range(n_layers):
        w = wb[2 * li][...]                          # (P*in, P*out), f32 or bf16
        b = wb[2 * li + 1][...].astype(jnp.float32)  # (1, P*out), f32
        acc = jnp.dot(h.astype(w.dtype), w, preferred_element_type=jnp.float32) + b
        if li < n_layers - 1:
            h = jnp.maximum(acc, 0.0)   # ReLU; dropout is identity in eval mode
        else:
            h = jax.nn.sigmoid(acc)     # final sigmoid in f32 (EUP)
    o_ref[...] = h.astype(o_ref.dtype)


def init_params(key, input_size, out_size, layers, hidden_dim, dtype=jnp.float32):
    """Parameter init mirroring nn.Linear shapes. W stored as (in, out), b as (out,)."""
    dims = []
    if layers == 1:
        dims.append((input_size, out_size))
    else:
        dims.append((input_size, hidden_dim))
        for _ in range(2, layers):
            dims.append((hidden_dim, hidden_dim))
        dims.append((hidden_dim, out_size))

    params = []
    for fan_in, fan_out in dims:
        key, kw, kb = jax.random.split(key, 3)
        bound = 1.0 / float(fan_in) ** 0.5
        w = jax.random.uniform(kw, (fan_in, fan_out), dtype, -bound, bound)
        b = jax.random.uniform(kb, (fan_out,), dtype, -bound, bound)
        params.append((w, b))
    return params


@functools.partial(jax.jit, static_argnames=("block_rows", "pack", "compute_dtype"))
def fcn_forward(x, params, block_rows=512, pack=8, compute_dtype=None):
    """Apply the network to x of shape (..., in_features).

    block_rows:    batch tile size in *packed* rows (1 packed row = `pack` rows).
    pack:          row-packing factor P; choose so pack*out_features is a
                   multiple of 128 for lane-dense output stores (P=8 for out=16).
    compute_dtype: e.g. jnp.bfloat16 to stream x / W in bf16 (f32 accumulate).
    """
    in_dim = x.shape[-1]
    out_dim = params[-1][0].shape[-1]
    lead_shape = x.shape[:-1]
    out_dtype = x.dtype
    P = pack

    xf = x.reshape(-1, in_dim)
    batch = xf.shape[0]

    # Packed-row geometry: pad so the batch reshapes cleanly to (rows_pad, P*in)
    # and tiles evenly.  Small batches collapse to a single grid step.
    rows_needed = -(-batch // P)
    tile_m = min(block_rows, _round_up(rows_needed, 16))
    rows_pad = _round_up(rows_needed, tile_m)
    bp = rows_pad * P
    if bp != batch:
        xf = jnp.pad(xf, ((0, bp - batch), (0, 0)))
    xp = xf.reshape(rows_pad, P * in_dim)            # free row-major view in HBM
    if compute_dtype is not None:
        xp = xp.astype(compute_dtype)
    w_dtype = compute_dtype if compute_dtype is not None else x.dtype

    # Block-diagonal ("row-packed") weights and lane-tiled biases.
    blocks = []
    for w, b in params:
        wb_ = jnp.kron(jnp.eye(P, dtype=w_dtype), w.astype(w_dtype))     # (P*in, P*out)
        bb_ = jnp.tile(b.astype(jnp.float32), P).reshape(1, P * b.shape[0])
        blocks.append((wb_, bb_))

    grid = (rows_pad // tile_m,)

    in_specs = [pl.BlockSpec((tile_m, P * in_dim), lambda i: (i, 0))]
    flat_wb = []
    for wb_, bb_ in blocks:
        # Constant block index -> fetched once, stays resident in VMEM.
        in_specs.append(pl.BlockSpec(wb_.shape, lambda i: (0, 0)))
        in_specs.append(pl.BlockSpec(bb_.shape, lambda i: (0, 0)))
        flat_wb += [wb_, bb_]
    out_specs = pl.BlockSpec((tile_m, P * out_dim), lambda i: (i, 0))

    flops = 2 * rows_pad * sum(wb_.shape[0] * wb_.shape[1] for wb_, _ in blocks)
    bytes_accessed = (
        xp.size * xp.dtype.itemsize
        + sum(wb_.size * wb_.dtype.itemsize + bb_.size * bb_.dtype.itemsize
              for wb_, bb_ in blocks)
        + rows_pad * P * out_dim * jnp.dtype(out_dtype).itemsize)
    cost = pl.CostEstimate(flops=flops,
                           transcendentals=rows_pad * P * out_dim,
                           bytes_accessed=bytes_accessed)

    out = pl.pallas_call(
        mlp_kernel,
        out_shape=jax.ShapeDtypeStruct((rows_pad, P * out_dim), out_dtype),
        grid=grid,
        in_specs=in_specs,
        out_specs=out_specs,
        compiler_params=pltpu.CompilerParams(dimension_semantics=("parallel",)),
        cost_estimate=cost,
    )(xp, *flat_wb)

    out = out.reshape(bp, out_dim)[:batch]           # free view + slice off padding
    return out.reshape(*lead_shape, out_dim)


def reference_forward(x, params):
    h = x.astype(jnp.float32)
    for li, (w, b) in enumerate(params):
        h = h @ w + b
        if li < len(params) - 1:
            h = jnp.maximum(h, 0.0)
        else:
            h = jax.nn.sigmoid(h)
    return h.astype(x.dtype)


if __name__ == "__main__":
    # Module config: input_size=32, out_size=16, layers=3, hidden_dim=32
    input_size, out_size, layers, hidden_dim = 32, 16, 3, 32

    key = jax.random.PRNGKey(0)
    key, kx = jax.random.split(key)
    x = jax.random.normal(kx, (2, 4, input_size), dtype=jnp.float32)
    params = init_params(key, input_size, out_size, layers, hidden_dim)

    # f32 path, tiny batch -> single grid step over the whole (padded) batch.
    y = jax.block_until_ready(fcn_forward(x, params))
    y_ref = reference_forward(x, params)
    assert y.shape == (2, 4, out_size)
    assert jnp.allclose(y, y_ref, atol=1e-5, rtol=1e-5)

    # Ragged batch + multi-step grid (exercises padding + weight residency).
    x2 = jax.random.normal(jax.random.PRNGKey(1), (3, 50, input_size), jnp.float32)
    y2 = jax.block_until_ready(fcn_forward(x2, params, block_rows=16))
    assert jnp.allclose(y2, reference_forward(x2, params), atol=1e-5, rtol=1e-5)

    # bf16 streaming path (v6e/v7x recommendation): bf16 x/W, f32 accumulate.
    y3 = jax.block_until_ready(fcn_forward(x, params, compute_dtype=jnp.bfloat16))
    assert jnp.allclose(y3.astype(jnp.float32), y_ref, atol=5e-2)

    print("KERNEL_OK")
</pallas_src>

<mosaic_0001>
module attributes {stable_mosaic.version = 11 : i64} {
  func.func @mlp_kernel(%arg0: i32, %arg1: memref<16x256xf32, #tpu.memory_space<vmem>>, %arg2: memref<256x256xf32, #tpu.memory_space<vmem>>, %arg3: memref<1x256xf32, #tpu.memory_space<vmem>>, %arg4: memref<256x256xf32, #tpu.memory_space<vmem>>, %arg5: memref<1x256xf32, #tpu.memory_space<vmem>>, %arg6: memref<256x128xf32, #tpu.memory_space<vmem>>, %arg7: memref<1x128xf32, #tpu.memory_space<vmem>>, %arg8: memref<16x128xf32, #tpu.memory_space<vmem>>) attributes {dimension_semantics = [#tpu.dimension_semantics<parallel>], iteration_bounds = array<i64: 1>, scalar_prefetch = 0 : i64, scratch_operands = 0 : i64, tpu.core_type = #tpu.core_type<tc>, window_params = [{transform_indices = @transform_0, window_bounds = array<i64: 16, 256>}, {pipeline_mode = #tpu.pipeline_mode<synchronous>, transform_indices = @transform_1, window_bounds = array<i64: 256, 256>}, {pipeline_mode = #tpu.pipeline_mode<synchronous>, transform_indices = @transform_2, window_bounds = array<i64: 1, 256>}, {pipeline_mode = #tpu.pipeline_mode<synchronous>, transform_indices = @transform_3, window_bounds = array<i64: 256, 256>}, {pipeline_mode = #tpu.pipeline_mode<synchronous>, transform_indices = @transform_4, window_bounds = array<i64: 1, 256>}, {pipeline_mode = #tpu.pipeline_mode<synchronous>, transform_indices = @transform_5, window_bounds = array<i64: 256, 128>}, {pipeline_mode = #tpu.pipeline_mode<synchronous>, transform_indices = @transform_6, window_bounds = array<i64: 1, 128>}, {transform_indices = @transform_7, window_bounds = array<i64: 16, 128>}]} {
    %c0 = arith.constant 0 : index
    %c0_0 = arith.constant 0 : index
    %0 = vector.load %arg1[%c0, %c0_0] : memref<16x256xf32, #tpu.memory_space<vmem>>, vector<16x256xf32>
    %c0_1 = arith.constant 0 : index
    %c0_2 = arith.constant 0 : index
    %1 = vector.load %arg2[%c0_1, %c0_2] : memref<256x256xf32, #tpu.memory_space<vmem>>, vector<256x256xf32>
    %c0_3 = arith.constant 0 : index
    %c0_4 = arith.constant 0 : index
    %2 = vector.load %arg3[%c0_3, %c0_4] : memref<1x256xf32, #tpu.memory_space<vmem>>, vector<1x256xf32>
    %cst = arith.constant dense<0.000000e+00> : vector<16x256xf32>
    %3 = tpu.matmul %0, %1, %cst {dimension_numbers = #tpu.dot_dimension_numbers<[1], [0], [0], [1], [0, 0, 1, 1], [], []>} : vector<16x256xf32>, vector<256x256xf32>, vector<16x256xf32> -> vector<16x256xf32>
    %4 = vector.broadcast %2 : vector<1x256xf32> to vector<16x256xf32>
    %5 = arith.addf %3, %4 : vector<16x256xf32>
    %cst_5 = arith.constant 0.000000e+00 : f32
    %6 = vector.broadcast %cst_5 : f32 to vector<16x256xf32>
    %7 = arith.maximumf %5, %6 : vector<16x256xf32>
    %c0_6 = arith.constant 0 : index
    %c0_7 = arith.constant 0 : index
    %8 = vector.load %arg4[%c0_6, %c0_7] : memref<256x256xf32, #tpu.memory_space<vmem>>, vector<256x256xf32>
    %c0_8 = arith.constant 0 : index
    %c0_9 = arith.constant 0 : index
    %9 = vector.load %arg5[%c0_8, %c0_9] : memref<1x256xf32, #tpu.memory_space<vmem>>, vector<1x256xf32>
    %cst_10 = arith.constant dense<0.000000e+00> : vector<16x256xf32>
    %10 = tpu.matmul %7, %8, %cst_10 {dimension_numbers = #tpu.dot_dimension_numbers<[1], [0], [0], [1], [0, 0, 1, 1], [], []>} : vector<16x256xf32>, vector<256x256xf32>, vector<16x256xf32> -> vector<16x256xf32>
    %11 = vector.broadcast %9 : vector<1x256xf32> to vector<16x256xf32>
    %12 = arith.addf %10, %11 : vector<16x256xf32>
    %cst_11 = arith.constant 0.000000e+00 : f32
    %13 = vector.broadcast %cst_11 : f32 to vector<16x256xf32>
    %14 = arith.maximumf %12, %13 : vector<16x256xf32>
    %c0_12 = arith.constant 0 : index
    %c0_13 = arith.constant 0 : index
    %15 = vector.load %arg6[%c0_12, %c0_13] : memref<256x128xf32, #tpu.memory_space<vmem>>, vector<256x128xf32>
    %c0_14 = arith.constant 0 : index
    %c0_15 = arith.constant 0 : index
    %16 = vector.load %arg7[%c0_14, %c0_15] : memref<1x128xf32, #tpu.memory_space<vmem>>, vector<1x128xf32>
    %cst_16 = arith.constant dense<0.000000e+00> : vector<16x128xf32>
    %17 = tpu.matmul %14, %15, %cst_16 {dimension_numbers = #tpu.dot_dimension_numbers<[1], [0], [0], [1], [0, 0, 1, 1], [], []>} : vector<16x256xf32>, vector<256x128xf32>, vector<16x128xf32> -> vector<16x128xf32>
    %18 = vector.broadcast %16 : vector<1x128xf32> to vector<16x128xf32>
    %19 = arith.addf %17, %18 : vector<16x128xf32>
    %20 = arith.negf %19 : vector<16x128xf32>
    %21 = math.exp %20 : vector<16x128xf32>
    %cst_17 = arith.constant 1.000000e+00 : f32
    %22 = vector.broadcast %cst_17 : f32 to vector<16x128xf32>
    %23 = arith.addf %22, %21 : vector<16x128xf32>
    %24 = arith.divf %22, %23 : vector<16x128xf32>
    %c0_18 = arith.constant 0 : index
    %c0_19 = arith.constant 0 : index
    %25 = vector.load %arg8[%c0_18, %c0_19] : memref<16x128xf32, #tpu.memory_space<vmem>>, vector<16x128xf32>
    tpu.vector_store %arg8[%c0_18, %c0_19], %24 {strides = array<i32>} : memref<16x128xf32, #tpu.memory_space<vmem>>, vector<16x128xf32>,
    return
  }
  func.func @transform_0(%arg0: i32) -> (i32, i32) {
    %c0_i32 = arith.constant 0 : i32
    %c0_i32_0 = arith.constant 0 : i32
    return %arg0, %c0_i32 : i32, i32
  }
  func.func @transform_1(%arg0: i32) -> (i32, i32) {
    %c0_i32 = arith.constant 0 : i32
    %c0_i32_0 = arith.constant 0 : i32
    %c0_i32_1 = arith.constant 0 : i32
    return %c0_i32, %c0_i32_0 : i32, i32
  }
  func.func @transform_2(%arg0: i32) -> (i32, i32) {
    %c0_i32 = arith.constant 0 : i32
    %c0_i32_0 = arith.constant 0 : i32
    %c0_i32_1 = arith.constant 0 : i32
    return %c0_i32, %c0_i32_0 : i32, i32
  }
  func.func @transform_3(%arg0: i32) -> (i32, i32) {
    %c0_i32 = arith.constant 0 : i32
    %c0_i32_0 = arith.constant 0 : i32
    %c0_i32_1 = arith.constant 0 : i32
    return %c0_i32, %c0_i32_0 : i32, i32
  }
  func.func @transform_4(%arg0: i32) -> (i32, i32) {
    %c0_i32 = arith.constant 0 : i32
    %c0_i32_0 = arith.constant 0 : i32
    %c0_i32_1 = arith.constant 0 : i32
    return %c0_i32, %c0_i32_0 : i32, i32
  }
  func.func @transform_5(%arg0: i32) -> (i32, i32) {
    %c0_i32 = arith.constant 0 : i32
    %c0_i32_0 = arith.constant 0 : i32
    %c0_i32_1 = arith.constant 0 : i32
    return %c0_i32, %c0_i32_0 : i32, i32
  }
  func.func @transform_6(%arg0: i32) -> (i32, i32) {
    %c0_i32 = arith.constant 0 : i32
    %c0_i32_0 = arith.constant 0 : i32
    %c0_i32_1 = arith.constant 0 : i32
    return %c0_i32, %c0_i32_0 : i32, i32
  }
  func.func @transform_7(%arg0: i32) -> (i32, i32) {
    %c0_i32 = arith.constant 0 : i32
    %c0_i32_0 = arith.constant 0 : i32
    return %arg0, %c0_i32 : i32, i32
  }
}

</mosaic_0001>

<llo_original>
// kernel: tile.18
$region0: #{tile.18}
  #allocation0 [shape = 's32[1]{0}', space=sflag, size = 0x4, scoped, tag = 'scoped memory for tile.18']
  %s0 = inlined_call_operand.vmem [shape: f32[32], index: 0, kind: input, shape index: {}]
  %s1 = inlined_call_operand.vmem [shape: f32[8,32], index: 1, kind: output, shape index: {}]
  // Predicated region
  $region2: #{tile.18} parent=0 // pred_check
    _
  $region3: #{tile.18} parent=0 // pred_check_branch
    %3 = sbr.rel (0) target = $region5
  $region4: #{tile.18} parent=0 // pred_region
    _
  $region5: #{tile.18} parent=0 // pred_fallthru
    _
  %v4 = vld [vmem:[%s0] ss:$0 sm:$0xff]
  %5 = vst [vmem:[%s1] sm:$0xff] %v4

// kernel: tile.19
$region0: #{tile.19}
  %s0 = inlined_call_operand.vmem [shape: f32[8,32], index: 0, kind: input, shape index: {}]
  %s1 = inlined_call_operand.vmem [shape: f32[1,256], index: 1, kind: output, shape index: {}]
  $region1: #{tile.19} parent=0
    #allocation0 [shape = 'u8[8192]{0}', space=vmem, size = 0x2000, scoped, tag = 'scoped mem for output reshape']
    %s2 = smov 3
    %v3 = vld [vmem:[%s0] ss:$4 sm:%s2]
    %vm4 = vcmask 261120
    %5 = vst.msk [vmem:[#allocation0] ss:$8 sm:$0x3] %vm4, %v3
    %s6 = scalar_lea.vmem %s0, 3
    %s7 = smov 3
    %v8 = vld [vmem:[%s6] ss:$4 sm:%s7]
    %9 = vrot.lane.b32.xlu0 %v8, 96
    %v10 = vpop.permute.xlu0 %9
    %vm11 = vcmask 1048320
    %12 = vst.msk [vmem:[#allocation0] ss:$8 sm:$0x3] %vm11, %v10
    %s13 = scalar_lea.vmem %s0, 2
    %s14 = smov 3
    %v15 = vld [vmem:[%s13] ss:$4 sm:%s14]
    %16 = vrot.lane.b32.xlu0 %v15, 64
    %v17 = vpop.permute.xlu0 %16
    %vm18 = vcmask 785920
    %19 = vst.msk [vmem:[#allocation0] ss:$8 sm:$0x3] %vm18, %v17
    %s20 = scalar_lea.vmem %s0, 1
    %s21 = smov 3
    %v22 = vld [vmem:[%s20] ss:$4 sm:%s21]
    %23 = vrot.lane.b32.xlu0 %v22, 32
    %v24 = vpop.permute.xlu0 %23
    %vm25 = vcmask 523520
    %26 = vst.msk [vmem:[#allocation0] ss:$8 sm:$0x3] %vm25, %v24
    %s28 = sshll.u32 1, 1
    %s29 = ssub.s32 %s28, 1
    %v31 = vld [vmem:[#allocation0] sm:%s29]
    %s32 = sshll.u32 1, 1
    %s33 = ssub.s32 %s32, 1
    %34 = vst [vmem:[%s1] sm:%s33] %v31
    %s35 = scalar_lea.vmem [#allocation0], 8
    %v36 = vld [vmem:[%s35] sm:%s29]
    %s37 = sshll.u32 1, 1
    %s38 = ssub.s32 %s37, 1
    %s39 = scalar_lea.vmem %s1, 1
    %40 = vst [vmem:[%s39] sm:%s38] %v36

// kernel: tile.28
$region0: #{tile.28}
  #allocation0 [shape = 's32[1]{0}', space=sflag, size = 0x4, scoped, tag = 'scoped memory for tile.28']
  %s0 = inlined_call_operand.vmem [shape: f32[16], index: 0, kind: input, shape index: {}]
  %s1 = inlined_call_operand.vmem [shape: f32[8,16], index: 1, kind: output, shape index: {}]
  // Predicated region
  $region2: #{tile.28} parent=0 // pred_check
    _
  $region3: #{tile.28} parent=0 // pred_check_branch
    %3 = sbr.rel (0) target = $region5
  $region4: #{tile.28} parent=0 // pred_region
    _
  $region5: #{tile.28} parent=0 // pred_fallthru
    _
  %v4 = vld [vmem:[%s0] ss:$0 sm:$0xff]
  %5 = vst [vmem:[%s1] sm:$0xff] %v4

// kernel: tile.29
$region0: #{tile.29}
  %s0 = inlined_call_operand.vmem [shape: f32[8,16], index: 0, kind: input, shape index: {}]
  %s1 = inlined_call_operand.vmem [shape: f32[1,128], index: 1, kind: output, shape index: {}]
  $region1: #{tile.29} parent=0
    #allocation0 [shape = 'u8[4096]{0}', space=vmem, size = 0x1000, scoped, tag = 'scoped mem for output reshape']
    %v2 = vld [vmem:[%s0] sm:$0x1]
    %vm3 = vcmask 130048
    %4 = vst.msk [vmem:[#allocation0] sm:$0x1] %vm3, %v2
    %s5 = scalar_lea.vmem %s0, 7
    %v6 = vld [vmem:[%s5] sm:$0x1]
    %7 = vrot.lane.b32.xlu0 %v6, 112
    %v8 = vpop.permute.xlu0 %7
    %vm9 = vcmask 1048448
    %10 = vst.msk [vmem:[#allocation0] sm:$0x1] %vm9, %v8
    %s11 = scalar_lea.vmem %s0, 6
    %v12 = vld [vmem:[%s11] sm:$0x1]
    %13 = vrot.lane.b32.xlu0 %v12, 96
    %v14 = vpop.permute.xlu0 %13
    %vm15 = vcmask 917248
    %16 = vst.msk [vmem:[#allocation0] sm:$0x1] %vm15, %v14
    %s17 = scalar_lea.vmem %s0, 5
    %v18 = vld [vmem:[%s17] sm:$0x1]
    %19 = vrot.lane.b32.xlu0 %v18, 80
    %v20 = vpop.permute.xlu0 %19
    %vm21 = vcmask 786048
    %22 = vst.msk [vmem:[#allocation0] sm:$0x1] %vm21, %v20
    %s23 = scalar_lea.vmem %s0, 4
    %v24 = vld [vmem:[%s23] sm:$0x1]
    %25 = vrot.lane.b32.xlu0 %v24, 64
    %v26 = vpop.permute.xlu0 %25
    %vm27 = vcmask 654848
    %28 = vst.msk [vmem:[#allocation0] sm:$0x1] %vm27, %v26
    %s29 = scalar_lea.vmem %s0, 3
    %v30 = vld [vmem:[%s29] sm:$0x1]
    %31 = vrot.lane.b32.xlu0 %v30, 48
    %v32 = vpop.permute.xlu0 %31
    %vm33 = vcmask 523648
    %34 = vst.msk [vmem:[#allocation0] sm:$0x1] %vm33, %v32
    %s35 = scalar_lea.vmem %s0, 2
    %v36 = vld [vmem:[%s35] sm:$0x1]
    %37 = vrot.lane.b32.xlu0 %v36, 32
    %v38 = vpop.permute.xlu0 %37
    %vm39 = vcmask 392448
    %40 = vst.msk [vmem:[#allocation0] sm:$0x1] %vm39, %v38
    %s41 = scalar_lea.vmem %s0, 1
    %v42 = vld [vmem:[%s41] sm:$0x1]
    %43 = vrot.lane.b32.xlu0 %v42, 16
    %v44 = vpop.permute.xlu0 %43
    %vm45 = vcmask 261248
    %46 = vst.msk [vmem:[#allocation0] sm:$0x1] %vm45, %v44
    %s48 = sshll.u32 1, 1
    %s49 = ssub.s32 %s48, 1
    %v51 = vld [vmem:[#allocation0] sm:%s49]
    %s52 = sshll.u32 1, 1
    %s53 = ssub.s32 %s52, 1
    %54 = vst [vmem:[%s1] sm:%s53] %v51

// kernel: fcn_forward.1
$region0: #{fcn_forward.1}
  #allocation0 [shape = 'u32[]', space=smem, size = 0x4, offset = 0x4, fixed_abs, tag = 'smem constant byte address 0x4 - core index']
  #allocation1 [shape = 'u32[144,128]{1,0:T(1,128)}', space=vmem, size = 0x12000, scoped, tag = 'internal scratch']
  %s0 = inlined_call_operand.vmem [shape: f32[16,256], index: 0, kind: input, shape index: {}]
  %s1 = inlined_call_operand.vmem [shape: f32[256,256], index: 1, kind: input, shape index: {}]
  %s2 = inlined_call_operand.vmem [shape: f32[1,256], index: 2, kind: input, shape index: {}]
  %s3 = inlined_call_operand.vmem [shape: f32[256,256], index: 3, kind: input, shape index: {}]
  %s4 = inlined_call_operand.vmem [shape: f32[1,256], index: 4, kind: input, shape index: {}]
  %s5 = inlined_call_operand.vmem [shape: f32[256,128], index: 5, kind: input, shape index: {}]
  %s6 = inlined_call_operand.vmem [shape: f32[1,128], index: 6, kind: input, shape index: {}]
  %s7 = inlined_call_operand.vmem [shape: f32[16,128], index: 7, kind: output, shape index: {}]
  %s8 = sld [smem:[#allocation0]]
  $region38: #{fcn_forward.1} parent=0
    _
  %s10 = ssub.s32 1, %s8
  %s11 = scalar_select 0, %s10, %s8
  // Predicated region
  $region2: #{fcn_forward.1} parent=0 // pred_check
    _
  $region3: #{fcn_forward.1} parent=0 // pred_check_branch
    %13 = sbr.rel (0) target = $region5
  $region4: #{fcn_forward.1} parent=0 // pred_region
    _
  $region5: #{fcn_forward.1} parent=0 // pred_fallthru
    _
  // Predicated region
  $region6: #{fcn_forward.1} parent=0 // pred_check
    _
  $region7: #{fcn_forward.1} parent=0 // pred_check_branch
    %15 = sbr.rel (0) target = $region9
  $region8: #{fcn_forward.1} parent=0 // pred_region
    _
  $region9: #{fcn_forward.1} parent=0 // pred_fallthru
    _
  // Predicated region
  $region10: #{fcn_forward.1} parent=0 // pred_check
    _
  $region11: #{fcn_forward.1} parent=0 // pred_check_branch
    %17 = sbr.rel (0) target = $region13
  $region12: #{fcn_forward.1} parent=0 // pred_region
    _
  $region13: #{fcn_forward.1} parent=0 // pred_fallthru
    _
  // Predicated region
  $region14: #{fcn_forward.1} parent=0 // pred_check
    _
  $region15: #{fcn_forward.1} parent=0 // pred_check_branch
    %19 = sbr.rel (0) target = $region17
  $region16: #{fcn_forward.1} parent=0 // pred_region
    _
  $region17: #{fcn_forward.1} parent=0 // pred_fallthru
    _
  // Predicated region
  $region18: #{fcn_forward.1} parent=0 // pred_check
    _
  $region19: #{fcn_forward.1} parent=0 // pred_check_branch
    %21 = sbr.rel (0) target = $region21
  $region20: #{fcn_forward.1} parent=0 // pred_region
    _
  $region21: #{fcn_forward.1} parent=0 // pred_fallthru
    _
  // Predicated region
  $region22: #{fcn_forward.1} parent=0 // pred_check
    _
  $region23: #{fcn_forward.1} parent=0 // pred_check_branch
    %23 = sbr.rel (0) target = $region25
  $region24: #{fcn_forward.1} parent=0 // pred_region
    _
  $region25: #{fcn_forward.1} parent=0 // pred_fallthru
    _
  // Predicated region
  $region26: #{fcn_forward.1} parent=0 // pred_check
    _
  $region27: #{fcn_forward.1} parent=0 // pred_check_branch
    %25 = sbr.rel (0) target = $region29
  $region28: #{fcn_forward.1} parent=0 // pred_region
    _
  $region29: #{fcn_forward.1} parent=0 // pred_fallthru
    _
  %v26 = vld [vmem:[%s0] sm:$0xff]
  %v27 = vld [vmem:[%s0 + $0x8] sm:$0xff]
  %v28 = vld [vmem:[%s0 + $0x10] sm:$0xff]
  %v29 = vld [vmem:[%s0 + $0x18] sm:$0xff]
  %v30 = vld [vmem:[%s1] sm:$0xff]
  %v31 = vld [vmem:[%s1 + $0x8] sm:$0xff]
  %v32 = vld [vmem:[%s1 + $0x10] sm:$0xff]
  %v33 = vld [vmem:[%s1 + $0x18] sm:$0xff]
  %v34 = vld [vmem:[%s1 + $0x20] sm:$0xff]
  %v35 = vld [vmem:[%s1 + $0x28] sm:$0xff]
  %v36 = vld [vmem:[%s1 + $0x30] sm:$0xff]
  %v37 = vld [vmem:[%s1 + $0x38] sm:$0xff]
  %v38 = vld [vmem:[%s1 + $0x40] sm:$0xff]
  %v39 = vld [vmem:[%s1 + $0x48] sm:$0xff]
  %v40 = vld [vmem:[%s1 + $0x50] sm:$0xff]
  %v41 = vld [vmem:[%s1 + $0x58] sm:$0xff]
  %v42 = vld [vmem:[%s1 + $0x60] sm:$0xff]
  %v43 = vld [vmem:[%s1 + $0x68] sm:$0xff]
  %v44 = vld [vmem:[%s1 + $0x70] sm:$0xff]
  %v45 = vld [vmem:[%s1 + $0x78] sm:$0xff]
  %v46 = vld [vmem:[%s1 + $0x80] sm:$0xff]
  %v47 = vld [vmem:[%s1 + $0x88] sm:$0xff]
  %v48 = vld [vmem:[%s1 + $0x90] sm:$0xff]
  %v49 = vld [vmem:[%s1 + $0x98] sm:$0xff]
  %v50 = vld [vmem:[%s1 + $0xa0] sm:$0xff]
  %v51 = vld [vmem:[%s1 + $0xa8] sm:$0xff]
  %v52 = vld [vmem:[%s1 + $0xb0] sm:$0xff]
  %v53 = vld [vmem:[%s1 + $0xb8] sm:$0xff]
  %v54 = vld [vmem:[%s1 + $0xc0] sm:$0xff]
  %v55 = vld [vmem:[%s1 + $0xc8] sm:$0xff]
  %v56 = vld [vmem:[%s1 + $0xd0] sm:$0xff]
  %v57 = vld [vmem:[%s1 + $0xd8] sm:$0xff]
  %v58 = vld [vmem:[%s1 + $0xe0] sm:$0xff]
  %v59 = vld [vmem:[%s1 + $0xe8] sm:$0xff]
  %v60 = vld [vmem:[%s1 + $0xf0] sm:$0xff]
  %v61 = vld [vmem:[%s1 + $0xf8] sm:$0xff]
  %v62 = vld [vmem:[%s1 + $0x100] sm:$0xff]
  %v63 = vld [vmem:[%s1 + $0x108] sm:$0xff]
  %v64 = vld [vmem:[%s1 + $0x110] sm:$0xff]
  %v65 = vld [vmem:[%s1 + $0x118] sm:$0xff]
  %v66 = vld [vmem:[%s1 + $0x120] sm:$0xff]
  %v67 = vld [vmem:[%s1 + $0x128] sm:$0xff]
  %v68 = vld [vmem:[%s1 + $0x130] sm:$0xff]
  %v69 = vld [vmem:[%s1 + $0x138] sm:$0xff]
  %v70 = vld [vmem:[%s1 + $0x140] sm:$0xff]
  %v71 = vld [vmem:[%s1 + $0x148] sm:$0xff]
  %v72 = vld [vmem:[%s1 + $0x150] sm:$0xff]
  %v73 = vld [vmem:[%s1 + $0x158] sm:$0xff]
  %v74 = vld [vmem:[%s1 + $0x160] sm:$0xff]
  %v75 = vld [vmem:[%s1 + $0x168] sm:$0xff]
  %v76 = vld [vmem:[%s1 + $0x170] sm:$0xff]
  %v77 = vld [vmem:[%s1 + $0x178] sm:$0xff]
  %v78 = vld [vmem:[%s1 + $0x180] sm:$0xff]
  %v79 = vld [vmem:[%s1 + $0x188] sm:$0xff]
  %v80 = vld [vmem:[%s1 + $0x190] sm:$0xff]
  %v81 = vld [vmem:[%s1 + $0x198] sm:$0xff]
  %v82 = vld [vmem:[%s1 + $0x1a0] sm:$0xff]
  %v83 = vld [vmem:[%s1 + $0x1a8] sm:$0xff]
  %v84 = vld [vmem:[%s1 + $0x1b0] sm:$0xff]
  %v85 = vld [vmem:[%s1 + $0x1b8] sm:$0xff]
  %v86 = vld [vmem:[%s1 + $0x1c0] sm:$0xff]
  %v87 = vld [vmem:[%s1 + $0x1c8] sm:$0xff]
  %v88 = vld [vmem:[%s1 + $0x1d0] sm:$0xff]
  %v89 = vld [vmem:[%s1 + $0x1d8] sm:$0xff]
  %v90 = vld [vmem:[%s1 + $0x1e0] sm:$0xff]
  %v91 = vld [vmem:[%s1 + $0x1e8] sm:$0xff]
  %v92 = vld [vmem:[%s1 + $0x1f0] sm:$0xff]
  %v93 = vld [vmem:[%s1 + $0x1f8] sm:$0xff]
  %v94 = vld [vmem:[%s2] sm:$0x3]
  %v96 = vlaneseq
  %v97 = vshrl.u32 %v96, 7
  %v98 = vsub.s32 0, %v97
  %v99 = vrot.slane %v94, %v98
  %v100 = vlaneseq
  %v101 = vshrl.u32 %v100, 7
  %v102 = vsub.s32 1, %v101
  %v103 = vrot.slane %v94, %v102
  %106 = vmatprep.subr.mxu0 %v61
  %107 = vmatpush1.msra.mxu0 %v60
  %108 = vmatprep.subr.mxu0 %v59
  %109 = vmatpush1.msra.mxu0 %v58
  %110 = vmatprep.subr.mxu0 %v57
  %111 = vmatpush1.msra.mxu0 %v56
  %112 = vmatprep.subr.mxu0 %v55
  %113 = vmatpush1.msra.mxu0 %v54
  %114 = vmatprep.subr.mxu0 %v53
  %115 = vmatpush1.msra.mxu0 %v52
  %116 = vmatprep.subr.mxu0 %v51
  %117 = vmatpush1.msra.mxu0 %v50
  %118 = vmatprep.subr.mxu0 %v49
  %119 = vmatpush1.msra.mxu0 %v48
  %120 = vmatprep.subr.mxu0 %v47
  %121 = vmatpush1.msra.mxu0 %v46
  %122 = vmatprep.subr.mxu0 %v45
  %123 = vmatpush1.msra.mxu0 %v44
  %124 = vmatprep.subr.mxu0 %v43
  %125 = vmatpush1.msra.mxu0 %v42
  %126 = vmatprep.subr.mxu0 %v41
  %127 = vmatpush1.msra.mxu0 %v40
  %128 = vmatprep.subr.mxu0 %v39
  %129 = vmatpush1.msra.mxu0 %v38
  %130 = vmatprep.subr.mxu0 %v37
  %131 = vmatpush1.msra.mxu0 %v36
  %132 = vmatprep.subr.mxu0 %v35
  %133 = vmatpush1.msra.mxu0 %v34
  %134 = vmatprep.subr.mxu0 %v33
  %135 = vmatpush1.msra.mxu0 %v32
  %136 = vmatprep.subr.mxu0 %v31
  %137 = vmatpush1.msra.mxu0 %v30
  %138 = vmatprep.subr.mxu0 %v93
  %139 = vmatpush2.msra.mxu0 %v92
  %140 = vmatprep.subr.mxu0 %v91
  %141 = vmatpush2.msra.mxu0 %v90
  %142 = vmatprep.subr.mxu0 %v89
  %143 = vmatpush2.msra.mxu0 %v88
  %144 = vmatprep.subr.mxu0 %v87
  %145 = vmatpush2.msra.mxu0 %v86
  %146 = vmatprep.subr.mxu0 %v85
  %147 = vmatpush2.msra.mxu0 %v84
  %148 = vmatprep.subr.mxu0 %v83
  %149 = vmatpush2.msra.mxu0 %v82
  %150 = vmatprep.subr.mxu0 %v81
  %151 = vmatpush2.msra.mxu0 %v80
  %152 = vmatprep.subr.mxu0 %v79
  %153 = vmatpush2.msra.mxu0 %v78
  %154 = vmatprep.subr.mxu0 %v77
  %155 = vmatpush2.msra.mxu0 %v76
  %156 = vmatprep.subr.mxu0 %v75
  %157 = vmatpush2.msra.mxu0 %v74
  %158 = vmatprep.subr.mxu0 %v73
  %159 = vmatpush2.msra.mxu0 %v72
  %160 = vmatprep.subr.mxu0 %v71
  %161 = vmatpush2.msra.mxu0 %v70
  %162 = vmatprep.subr.mxu0 %v69
  %163 = vmatpush2.msra.mxu0 %v68
  %164 = vmatprep.subr.mxu0 %v67
  %165 = vmatpush2.msra.mxu0 %v66
  %166 = vmatprep.subr.mxu0 %v65
  %167 = vmatpush2.msra.mxu0 %v64
  %168 = vmatprep.subr.mxu0 %v63
  %169 = vmatpush2.msra.mxu0 %v62
  %170 = vmatprep.mubr.f32.mxu0 %v27
  %171 = vmatmul.mubr.f32.gmra.mxu0 %v26
  %v172 = vpop.f32.mrf.mxu0
  %v173 = vadd.f32 %v99, %v172
  %v174 = vpop.f32.mrf.mxu0
  %v175 = vadd.f32 %v103, %v174
  %176 = vmatprep.mubr.f32.mxu0 %v29
  %177 = vmatmul.mubr.f32.gmra.mxu0 %v28
  %v178 = vpop.f32.mrf.mxu0
  %v179 = vadd.f32 %v99, %v178
  %v180 = vpop.f32.mrf.mxu0
  %v181 = vadd.f32 %v103, %v180
  %182 = vdwg.mxu0
  %v183 = vmax.f32 %v173, 0.0
  %v184 = vmax.f32 %v175, 0.0
  %v185 = vmax.f32 %v179, 0.0
  %v186 = vmax.f32 %v181, 0.0
  %v187 = vld [vmem:[%s3] sm:$0xff]
  %v188 = vld [vmem:[%s3 + $0x8] sm:$0xff]
  %v189 = vld [vmem:[%s3 + $0x10] sm:$0xff]
  %v190 = vld [vmem:[%s3 + $0x18] sm:$0xff]
  %v191 = vld [vmem:[%s3 + $0x20] sm:$0xff]
  %v192 = vld [vmem:[%s3 + $0x28] sm:$0xff]
  %v193 = vld [vmem:[%s3 + $0x30] sm:$0xff]
  %v194 = vld [vmem:[%s3 + $0x38] sm:$0xff]
  %v195 = vld [vmem:[%s3 + $0x40] sm:$0xff]
  %v196 = vld [vmem:[%s3 + $0x48] sm:$0xff]
  %v197 = vld [vmem:[%s3 + $0x50] sm:$0xff]
  %v198 = vld [vmem:[%s3 + $0x58] sm:$0xff]
  %v199 = vld [vmem:[%s3 + $0x60] sm:$0xff]
  %v200 = vld [vmem:[%s3 + $0x68] sm:$0xff]
  %v201 = vld [vmem:[%s3 + $0x70] sm:$0xff]
  %v202 = vld [vmem:[%s3 + $0x78] sm:$0xff]
  %v203 = vld [vmem:[%s3 + $0x80] sm:$0xff]
  %v204 = vld [vmem:[%s3 + $0x88] sm:$0xff]
  %v205 = vld [vmem:[%s3 + $0x90] sm:$0xff]
  %v206 = vld [vmem:[%s3 + $0x98] sm:$0xff]
  %v207 = vld [vmem:[%s3 + $0xa0] sm:$0xff]
  %v208 = vld [vmem:[%s3 + $0xa8] sm:$0xff]
  %v209 = vld [vmem:[%s3 + $0xb0] sm:$0xff]
  %v210 = vld [vmem:[%s3 + $0xb8] sm:$0xff]
  %v211 = vld [vmem:[%s3 + $0xc0] sm:$0xff]
  %v212 = vld [vmem:[%s3 + $0xc8] sm:$0xff]
  %v213 = vld [vmem:[%s3 + $0xd0] sm:$0xff]
  %v214 = vld [vmem:[%s3 + $0xd8] sm:$0xff]
  %v215 = vld [vmem:[%s3 + $0xe0] sm:$0xff]
  %v216 = vld [vmem:[%s3 + $0xe8] sm:$0xff]
  %v217 = vld [vmem:[%s3 + $0xf0] sm:$0xff]
  %v218 = vld [vmem:[%s3 + $0xf8] sm:$0xff]
  %v219 = vld [vmem:[%s3 + $0x100] sm:$0xff]
  %v220 = vld [vmem:[%s3 + $0x108] sm:$0xff]
  %v221 = vld [vmem:[%s3 + $0x110] sm:$0xff]
  %v222 = vld [vmem:[%s3 + $0x118] sm:$0xff]
  %v223 = vld [vmem:[%s3 + $0x120] sm:$0xff]
  %v224 = vld [vmem:[%s3 + $0x128] sm:$0xff]
  %v225 = vld [vmem:[%s3 + $0x130] sm:$0xff]
  %v226 = vld [vmem:[%s3 + $0x138] sm:$0xff]
  %v227 = vld [vmem:[%s3 + $0x140] sm:$0xff]
  %v228 = vld [vmem:[%s3 + $0x148] sm:$0xff]
  %v229 = vld [vmem:[%s3 + $0x150] sm:$0xff]
  %v230 = vld [vmem:[%s3 + $0x158] sm:$0xff]
  %v231 = vld [vmem:[%s3 + $0x160] sm:$0xff]
  %v232 = vld [vmem:[%s3 + $0x168] sm:$0xff]
  %v233 = vld [vmem:[%s3 + $0x170] sm:$0xff]
  %v234 = vld [vmem:[%s3 + $0x178] sm:$0xff]
  %v235 = vld [vmem:[%s3 + $0x180] sm:$0xff]
  %v236 = vld [vmem:[%s3 + $0x188] sm:$0xff]
  %v237 = vld [vmem:[%s3 + $0x190] sm:$0xff]
  %v238 = vld [vmem:[%s3 + $0x198] sm:$0xff]
  %v239 = vld [vmem:[%s3 + $0x1a0] sm:$0xff]
  %v240 = vld [vmem:[%s3 + $0x1a8] sm:$0xff]
  %v241 = vld [vmem:[%s3 + $0x1b0] sm:$0xff]
  %v242 = vld [vmem:[%s3 + $0x1b8] sm:$0xff]
  %v243 = vld [vmem:[%s3 + $0x1c0] sm:$0xff]
  %v244 = vld [vmem:[%s3 + $0x1c8] sm:$0xff]
  %v245 = vld [vmem:[%s3 + $0x1d0] sm:$0xff]
  %v246 = vld [vmem:[%s3 + $0x1d8] sm:$0xff]
  %v247 = vld [vmem:[%s3 + $0x1e0] sm:$0xff]
  %v248 = vld [vmem:[%s3 + $0x1e8] sm:$0xff]
  %v249 = vld [vmem:[%s3 + $0x1f0] sm:$0xff]
  %v250 = vld [vmem:[%s3 + $0x1f8] sm:$0xff]
  %v251 = vld [vmem:[%s4] sm:$0x3]
  %v253 = vlaneseq
  %v254 = vshrl.u32 %v253, 7
  %v255 = vsub.s32 0, %v254
  %v256 = vrot.slane %v251, %v255
  %v257 = vlaneseq
  %v258 = vshrl.u32 %v257, 7
  %v259 = vsub.s32 1, %v258
  %v260 = vrot.slane %v251, %v259
  %263 = vmatprep.subr.mxu0 %v218
  %264 = vmatpush1.msra.mxu0 %v217
  %265 = vmatprep.subr.mxu0 %v216
  %266 = vmatpush1.msra.mxu0 %v215
  %267 = vmatprep.subr.mxu0 %v214
  %268 = vmatpush1.msra.mxu0 %v213
  %269 = vmatprep.subr.mxu0 %v212
  %270 = vmatpush1.msra.mxu0 %v211
  %271 = vmatprep.subr.mxu0 %v210
  %272 = vmatpush1.msra.mxu0 %v209
  %273 = vmatprep.subr.mxu0 %v208
  %274 = vmatpush1.msra.mxu0 %v207
  %275 = vmatprep.subr.mxu0 %v206
  %276 = vmatpush1.msra.mxu0 %v205
  %277 = vmatprep.subr.mxu0 %v204
  %278 = vmatpush1.msra.mxu0 %v203
  %279 = vmatprep.subr.mxu0 %v202
  %280 = vmatpush1.msra.mxu0 %v201
  %281 = vmatprep.subr.mxu0 %v200
  %282 = vmatpush1.msra.mxu0 %v199
  %283 = vmatprep.subr.mxu0 %v198
  %284 = vmatpush1.msra.mxu0 %v197
  %285 = vmatprep.subr.mxu0 %v196
  %286 = vmatpush1.msra.mxu0 %v195
  %287 = vmatprep.subr.mxu0 %v194
  %288 = vmatpush1.msra.mxu0 %v193
  %289 = vmatprep.subr.mxu0 %v192
  %290 = vmatpush1.msra.mxu0 %v191
  %291 = vmatprep.subr.mxu0 %v190
  %292 = vmatpush1.msra.mxu0 %v189
  %293 = vmatprep.subr.mxu0 %v188
  %294 = vmatpush1.msra.mxu0 %v187
  %295 = vmatprep.subr.mxu0 %v250
  %296 = vmatpush2.msra.mxu0 %v249
  %297 = vmatprep.subr.mxu0 %v248
  %298 = vmatpush2.msra.mxu0 %v247
  %299 = vmatprep.subr.mxu0 %v246
  %300 = vmatpush2.msra.mxu0 %v245
  %301 = vmatprep.subr.mxu0 %v244
  %302 = vmatpush2.msra.mxu0 %v243
  %303 = vmatprep.subr.mxu0 %v242
  %304 = vmatpush2.msra.mxu0 %v241
  %305 = vmatprep.subr.mxu0 %v240
  %306 = vmatpush2.msra.mxu0 %v239
  %307 = vmatprep.subr.mxu0 %v238
  %308 = vmatpush2.msra.mxu0 %v237
  %309 = vmatprep.subr.mxu0 %v236
  %310 = vmatpush2.msra.mxu0 %v235
  %311 = vmatprep.subr.mxu0 %v234
  %312 = vmatpush2.msra.mxu0 %v233
  %313 = vmatprep.subr.mxu0 %v232
  %314 = vmatpush2.msra.mxu0 %v231
  %315 = vmatprep.subr.mxu0 %v230
  %316 = vmatpush2.msra.mxu0 %v229
  %317 = vmatprep.subr.mxu0 %v228
  %318 = vmatpush2.msra.mxu0 %v227
  %319 = vmatprep.subr.mxu0 %v226
  %320 = vmatpush2.msra.mxu0 %v225
  %321 = vmatprep.subr.mxu0 %v224
  %322 = vmatpush2.msra.mxu0 %v223
  %323 = vmatprep.subr.mxu0 %v222
  %324 = vmatpush2.msra.mxu0 %v221
  %325 = vmatprep.subr.mxu0 %v220
  %326 = vmatpush2.msra.mxu0 %v219
  %327 = vmatprep.mubr.f32.mxu0 %v184
  %328 = vmatmul.mubr.f32.gmra.mxu0 %v183
  %v329 = vpop.f32.mrf.mxu0
  %v330 = vadd.f32 %v256, %v329
  %v331 = vpop.f32.mrf.mxu0
  %v332 = vadd.f32 %v260, %v331
  %333 = vmatprep.mubr.f32.mxu0 %v186
  %334 = vmatmul.mubr.f32.gmra.mxu0 %v185
  %v335 = vpop.f32.mrf.mxu0
  %v336 = vadd.f32 %v256, %v335
  %v337 = vpop.f32.mrf.mxu0
  %v338 = vadd.f32 %v260, %v337
  %339 = vdwg.mxu0
  %v340 = vmax.f32 %v330, 0.0
  %v341 = vmax.f32 %v332, 0.0
  %v342 = vmax.f32 %v336, 0.0
  %v343 = vmax.f32 %v338, 0.0
  %v344 = vld [vmem:[%s5] sm:$0xff]
  %v345 = vld [vmem:[%s5 + $0x8] sm:$0xff]
  %v346 = vld [vmem:[%s5 + $0x10] sm:$0xff]
  %v347 = vld [vmem:[%s5 + $0x18] sm:$0xff]
  %v348 = vld [vmem:[%s5 + $0x20] sm:$0xff]
  %v349 = vld [vmem:[%s5 + $0x28] sm:$0xff]
  %v350 = vld [vmem:[%s5 + $0x30] sm:$0xff]
  %v351 = vld [vmem:[%s5 + $0x38] sm:$0xff]
  %v352 = vld [vmem:[%s5 + $0x40] sm:$0xff]
  %v353 = vld [vmem:[%s5 + $0x48] sm:$0xff]
  %v354 = vld [vmem:[%s5 + $0x50] sm:$0xff]
  %v355 = vld [vmem:[%s5 + $0x58] sm:$0xff]
  %v356 = vld [vmem:[%s5 + $0x60] sm:$0xff]
  %v357 = vld [vmem:[%s5 + $0x68] sm:$0xff]
  %v358 = vld [vmem:[%s5 + $0x70] sm:$0xff]
  %v359 = vld [vmem:[%s5 + $0x78] sm:$0xff]
  %v360 = vld [vmem:[%s5 + $0x80] sm:$0xff]
  %v361 = vld [vmem:[%s5 + $0x88] sm:$0xff]
  %v362 = vld [vmem:[%s5 + $0x90] sm:$0xff]
  %v363 = vld [vmem:[%s5 + $0x98] sm:$0xff]
  %v364 = vld [vmem:[%s5 + $0xa0] sm:$0xff]
  %v365 = vld [vmem:[%s5 + $0xa8] sm:$0xff]
  %v366 = vld [vmem:[%s5 + $0xb0] sm:$0xff]
  %v367 = vld [vmem:[%s5 + $0xb8] sm:$0xff]
  %v368 = vld [vmem:[%s5 + $0xc0] sm:$0xff]
  %v369 = vld [vmem:[%s5 + $0xc8] sm:$0xff]
  %v370 = vld [vmem:[%s5 + $0xd0] sm:$0xff]
  %v371 = vld [vmem:[%s5 + $0xd8] sm:$0xff]
  %v372 = vld [vmem:[%s5 + $0xe0] sm:$0xff]
  %v373 = vld [vmem:[%s5 + $0xe8] sm:$0xff]
  %v374 = vld [vmem:[%s5 + $0xf0] sm:$0xff]
  %v375 = vld [vmem:[%s5 + $0xf8] sm:$0xff]
  %v376 = vld [vmem:[%s6] sm:$0x1]
  %v378 = vlaneseq
  %v379 = vshrl.u32 %v378, 7
  %v380 = vsub.s32 0, %v379
  %v381 = vrot.slane %v376, %v380
  %383 = vmatprep.subr.mxu0 0.0
  %384 = vmatpush1.msra.mxu0 %v359
  %385 = vmatprep.subr.mxu0 0.0
  %386 = vmatpush1.msra.mxu0 %v358
  %387 = vmatprep.subr.mxu0 0.0
  %388 = vmatpush1.msra.mxu0 %v357
  %389 = vmatprep.subr.mxu0 0.0
  %390 = vmatpush1.msra.mxu0 %v356
  %391 = vmatprep.subr.mxu0 0.0
  %392 = vmatpush1.msra.mxu0 %v355
  %393 = vmatprep.subr.mxu0 0.0
  %394 = vmatpush1.msra.mxu0 %v354
  %395 = vmatprep.subr.mxu0 0.0
  %396 = vmatpush1.msra.mxu0 %v353
  %397 = vmatprep.subr.mxu0 0.0
  %398 = vmatpush1.msra.mxu0 %v352
  %399 = vmatprep.subr.mxu0 0.0
  %400 = vmatpush1.msra.mxu0 %v351
  %401 = vmatprep.subr.mxu0 0.0
  %402 = vmatpush1.msra.mxu0 %v350
  %403 = vmatprep.subr.mxu0 0.0
  %404 = vmatpush1.msra.mxu0 %v349
  %405 = vmatprep.subr.mxu0 0.0
  %406 = vmatpush1.msra.mxu0 %v348
  %407 = vmatprep.subr.mxu0 0.0
  %408 = vmatpush1.msra.mxu0 %v347
  %409 = vmatprep.subr.mxu0 0.0
  %410 = vmatpush1.msra.mxu0 %v346
  %411 = vmatprep.subr.mxu0 0.0
  %412 = vmatpush1.msra.mxu0 %v345
  %413 = vmatprep.subr.mxu0 0.0
  %414 = vmatpush1.msra.mxu0 %v344
  %415 = vmatprep.subr.mxu0 0.0
  %416 = vmatpush2.msra.mxu0 %v375
  %417 = vmatprep.subr.mxu0 0.0
  %418 = vmatpush2.msra.mxu0 %v374
  %419 = vmatprep.subr.mxu0 0.0
  %420 = vmatpush2.msra.mxu0 %v373
  %421 = vmatprep.subr.mxu0 0.0
  %422 = vmatpush2.msra.mxu0 %v372
  %423 = vmatprep.subr.mxu0 0.0
  %424 = vmatpush2.msra.mxu0 %v371
  %425 = vmatprep.subr.mxu0 0.0
  %426 = vmatpush2.msra.mxu0 %v370
  %427 = vmatprep.subr.mxu0 0.0
  %428 = vmatpush2.msra.mxu0 %v369
  %429 = vmatprep.subr.mxu0 0.0
  %430 = vmatpush2.msra.mxu0 %v368
  %431 = vmatprep.subr.mxu0 0.0
  %432 = vmatpush2.msra.mxu0 %v367
  %433 = vmatprep.subr.mxu0 0.0
  %434 = vmatpush2.msra.mxu0 %v366
  %435 = vmatprep.subr.mxu0 0.0
  %436 = vmatpush2.msra.mxu0 %v365
  %437 = vmatprep.subr.mxu0 0.0
  %438 = vmatpush2.msra.mxu0 %v364
  %439 = vmatprep.subr.mxu0 0.0
  %440 = vmatpush2.msra.mxu0 %v363
  %441 = vmatprep.subr.mxu0 0.0
  %442 = vmatpush2.msra.mxu0 %v362
  %443 = vmatprep.subr.mxu0 0.0
  %444 = vmatpush2.msra.mxu0 %v361
  %445 = vmatprep.subr.mxu0 0.0
  %446 = vmatpush2.msra.mxu0 %v360
  %447 = vmatprep.mubr.f32.mxu0 %v341
  %448 = vmatmul.mubr.f32.gmra.mxu0 %v340
  %v449 = vpop.f32.mrf.mxu0
  %v450 = vadd.f32 %v381, %v449
  %v451 = vpop.f32.mrf.mxu0
  %452 = vmatprep.mubr.f32.mxu0 %v343
  %453 = vmatmul.mubr.f32.gmra.mxu0 %v342
  %v454 = vpop.f32.mrf.mxu0
  %v455 = vadd.f32 %v381, %v454
  %v456 = vpop.f32.mrf.mxu0
  %457 = vdwg.mxu0
  %v458 = vxor.u32 %v450, 2147483648
  %v459 = vxor.u32 %v455, 2147483648
  %v460 = vmul.f32 %v458, 1.442695
  %v461 = vpow.pop %v460
  %v462 = vmul.f32 %v459, 1.442695
  %v463 = vpow.pop %v462
  %v464 = vadd.f32 %v461, 1.0
  %v465 = vadd.f32 %v463, 1.0
  %v466 = vrcp.pop %v464
  %v467 = vmul.f32 1.0, %v466
  %v468 = vrcp.pop %v465
  %v469 = vmul.f32 1.0, %v468
  %470 = vst [vmem:[%s7] sm:$0xff] %v467
  %471 = vst [vmem:[%s7 + $0x8] sm:$0xff] %v469
  // Predicated region
  $region30: #{fcn_forward.1} parent=0 // pred_check
    _
  $region31: #{fcn_forward.1} parent=0 // pred_check_branch
    %473 = sbr.rel (0) target = $region33
  $region32: #{fcn_forward.1} parent=0 // pred_region
    _
  $region33: #{fcn_forward.1} parent=0 // pred_fallthru
    _
  // Predicated region
  $region34: #{fcn_forward.1} parent=0 // pred_check
    _
  $region35: #{fcn_forward.1} parent=0 // pred_check_branch
    %475 = sbr.rel (0) target = $region37
  $region36: #{fcn_forward.1} parent=0 // pred_region
    _
  $region37: #{fcn_forward.1} parent=0 // pred_fallthru
    _

</llo_original>
